<compile_context>
chip_gen: v7x
topology: tpu7x:2x2x1
jax: 0.10.0
libtpu: 0.0.40
codegen_flags: <defaults>
</compile_context>

<pallas_src>
import jax
import jax.numpy as jnp
from jax.experimental import pallas as pl
from jax.experimental.pallas import tpu as pltpu


def _dummy_vlm_kernel(x_ref, p_ref, o_ref):
    # x_ref: SMEM f32[1]     -- input scalar
    # p_ref: SMEM f32[6]     -- [w0, w1, w2, b0, b1, b2]
    #                           (llm.layers[0], llm.layers[1], vision_backbone)
    # o_ref: SMEM f32[1]     -- output scalar
    x = x_ref[0]
    x = x * p_ref[0] + p_ref[3]   # llm_backbone.layers[0]: Linear(1,1)
    x = x * p_ref[1] + p_ref[4]   # llm_backbone.layers[1]: Linear(1,1)
    x = x * p_ref[2] + p_ref[5]   # vision_backbone:        Linear(1,1)
    o_ref[0] = x


@jax.jit
def dummy_vlm_forward(x, params):
    """x: (1,1) f32; params: (6,) f32 = [w0, w1, w2, b0, b1, b2] (packed at init)."""
    out = pl.pallas_call(
        _dummy_vlm_kernel,
        out_shape=jax.ShapeDtypeStruct((1,), jnp.float32),
        in_specs=[
            pl.BlockSpec(memory_space=pltpu.SMEM),   # x scalar
            pl.BlockSpec(memory_space=pltpu.SMEM),   # packed weights/biases
        ],
        out_specs=pl.BlockSpec(memory_space=pltpu.SMEM),
        # 6 flops (3 mul + 3 add); 4 B x + 24 B params + 4 B out = 32 B.
        cost_estimate=pl.CostEstimate(flops=6, transcendentals=0,
                                      bytes_accessed=32),
    )(x.reshape(1), params)
    return out.reshape(1, 1)


def init_params(key):
    """Deterministic init mimicking nn.Linear(1,1): U(-1, 1) since fan_in=1."""
    kw, kb = jax.random.split(key)
    # order: [llm_backbone.layers[0], llm_backbone.layers[1], vision_backbone]
    weights = jax.random.uniform(kw, (3,), jnp.float32, minval=-1.0, maxval=1.0)
    biases = jax.random.uniform(kb, (3,), jnp.float32, minval=-1.0, maxval=1.0)
    return weights, biases


def pack_params(weights, biases):
    """Done ONCE at init time (not per call): single 1-D f32[6] SMEM operand."""
    return jnp.concatenate([weights, biases])   # already f32; no astype needed


if __name__ == "__main__":
    root = jax.random.PRNGKey(0)
    kx, kp = jax.random.split(root)
    x = jax.random.normal(kx, (1, 1), dtype=jnp.float32)
    weights, biases = init_params(kp)
    params = jax.block_until_ready(pack_params(weights, biases))  # init-time cost

    out = dummy_vlm_forward(x, params)
    out = jax.block_until_ready(out)

    # Pure-JAX reference: the original 3-layer sequential affine chain
    # (same evaluation order as the kernel).
    ref = x
    for i in range(3):
        ref = ref * weights[i] + biases[i]

    assert out.shape == (1, 1) and out.dtype == jnp.float32
    assert jnp.allclose(out, ref, rtol=1e-6, atol=1e-7)

    print("KERNEL_OK")
</pallas_src>

<mosaic_0001>
module attributes {stable_mosaic.version = 11 : i64} {
  func.func @_dummy_vlm_kernel(%arg0: memref<1xf32, #tpu.memory_space<smem>>, %arg1: memref<6xf32, #tpu.memory_space<smem>>, %arg2: memref<1xf32, #tpu.memory_space<smem>>) attributes {dimension_semantics = [], scalar_prefetch = 0 : i64, scratch_operands = 0 : i64, tpu.core_type = #tpu.core_type<tc>} {
    %c0 = arith.constant 0 : index
    %0 = memref.load %arg0[%c0] : memref<1xf32, #tpu.memory_space<smem>>
    %c0_0 = arith.constant 0 : index
    %1 = memref.load %arg1[%c0_0] : memref<6xf32, #tpu.memory_space<smem>>
    %2 = arith.mulf %0, %1 : f32
    %c3 = arith.constant 3 : index
    %3 = memref.load %arg1[%c3] : memref<6xf32, #tpu.memory_space<smem>>
    %4 = arith.addf %2, %3 : f32
    %c1 = arith.constant 1 : index
    %5 = memref.load %arg1[%c1] : memref<6xf32, #tpu.memory_space<smem>>
    %6 = arith.mulf %4, %5 : f32
    %c4 = arith.constant 4 : index
    %7 = memref.load %arg1[%c4] : memref<6xf32, #tpu.memory_space<smem>>
    %8 = arith.addf %6, %7 : f32
    %c2 = arith.constant 2 : index
    %9 = memref.load %arg1[%c2] : memref<6xf32, #tpu.memory_space<smem>>
    %10 = arith.mulf %8, %9 : f32
    %c5 = arith.constant 5 : index
    %11 = memref.load %arg1[%c5] : memref<6xf32, #tpu.memory_space<smem>>
    %12 = arith.addf %10, %11 : f32
    %c0_1 = arith.constant 0 : index
    %13 = memref.load %arg2[%c0_1] : memref<1xf32, #tpu.memory_space<smem>>
    memref.store %12, %arg2[%c0_1] : memref<1xf32, #tpu.memory_space<smem>>
    return
  }
}

</mosaic_0001>

<llo_original>
// kernel: dummy_vlm_forward.1
$region0: #{dummy_vlm_forward.1}
  #allocation0 [shape = 'u32[]', space=smem, size = 0x4, offset = 0x4, fixed_abs, tag = 'smem constant byte address 0x4 - core index']
  #allocation1 [shape = 'u32[144,128]{1,0:T(1,128)}', space=vmem, size = 0x12000, scoped, tag = 'internal scratch']
  #allocation2 [shape = 'f32[1]{0:T(128)S(6)}', space=smem, size = 0x200, scoped, tag = 'scoped memory for dummy_vlm_forward.1']
  %s0 = inlined_call_operand.<no memory space> [shape: f32[1], index: 0, kind: input, shape index: {}]
  %s1 = inlined_call_operand.vmem [shape: f32[6], index: 1, kind: input, shape index: {}]
  %s2 = inlined_call_operand.hbm [shape: f32[1], index: 2, kind: output, shape index: {}]
  %s3 = sld [smem:[#allocation0]]
  $region22: #{dummy_vlm_forward.1} parent=0
    _
  %s5 = ssub.s32 1, %s3
  %s6 = scalar_select 0, %s5, %s3
  %7 = sst [smem:[#allocation2]] %s0
  $region1: #{dummy_vlm_forward.1} parent=0
    #allocation3 [shape = 'u8[512]{0}', space=smem, size = 0x200, scoped, tag = 'input window, operand 1, single buffered']
    #allocation4 [shape = 's32[1]{0}', space=sflag, size = 0x4, scoped, tag = 'scoped memory for dummy_vlm_forward.1']
    #allocation5 [shape = 's32[1]{0}', space=sflag, size = 0x4, scoped, tag = 'scoped memory for dummy_vlm_forward.1']
    #allocation6 [shape = 'u8[512]{0}', space=smem, size = 0x200, scoped, tag = 'output window, operand 0, single buffered']
    %8 = vsyncpa [#allocation5], 0
    %9 = vsyncpa [#allocation4], 0
    // Predicated region
    $region2: #{dummy_vlm_forward.1} parent=1 // pred_check
      _
    $region3: #{dummy_vlm_forward.1} parent=1 // pred_check_branch
      %11 = sbr.rel (0) target = $region5
    $region4: #{dummy_vlm_forward.1} parent=1 // pred_region
      _
    $region5: #{dummy_vlm_forward.1} parent=1 // pred_fallthru
      _
    // Predicated region
    $region6: #{dummy_vlm_forward.1} parent=1 // pred_check
      _
    $region7: #{dummy_vlm_forward.1} parent=1 // pred_check_branch
      %13 = sbr.rel (0) target = $region9
    $region8: #{dummy_vlm_forward.1} parent=1 // pred_region
      %s15 = ssub.s32 16, 16
      %16 = vsyncadd [#allocation5], %s15
      %s18 = sshll.u32 %s1, 4
      %s19 = int_to_ptr.vmem [resolvable:$true] %s18
      %21 = dma.vmem_to_smem %s19, 16, [#allocation3], [#allocation5]
    $region9: #{dummy_vlm_forward.1} parent=1 // pred_fallthru
      _
    // Predicated region
    $region10: #{dummy_vlm_forward.1} parent=1 // pred_check
      _
    $region11: #{dummy_vlm_forward.1} parent=1 // pred_check_branch
      %23 = sbr.rel (0) target = $region13
    $region12: #{dummy_vlm_forward.1} parent=1 // pred_region
      %24 = dma.done [#allocation5], 16
    $region13: #{dummy_vlm_forward.1} parent=1 // pred_fallthru
      _
    %25 = sfence
    %s26 = sld [smem:[#allocation2]]
    %s27 = sld [smem:[#allocation3]]
    %s28 = smul.f32 %s26, %s27
    %s29 = sld [smem:[#allocation3 + $0x3]]
    %s30 = sadd.f32 %s28, %s29
    %s31 = sld [smem:[#allocation3 + $0x1]]
    %s32 = smul.f32 %s30, %s31
    %s33 = sld [smem:[#allocation3 + $0x4]]
    %s34 = sadd.f32 %s32, %s33
    %s35 = sld [smem:[#allocation3 + $0x2]]
    %s36 = smul.f32 %s34, %s35
    %s37 = sld [smem:[#allocation3 + $0x5]]
    %s38 = sadd.f32 %s36, %s37
    %s39 = scalar_lea.smem [#allocation6], 0
    %40 = sst [smem:[%s39]] %s38
    // Predicated region
    $region14: #{dummy_vlm_forward.1} parent=1 // pred_check
      _
    $region15: #{dummy_vlm_forward.1} parent=1 // pred_check_branch
      %42 = sbr.rel (0) target = $region17
    $region16: #{dummy_vlm_forward.1} parent=1 // pred_region
      %s44 = ssub.s32 16, 16
      %45 = vsyncadd [#allocation4], %s44
      %48 = dma.smem_to_hbm [#allocation6], 16, %s2, [#allocation4]
    $region17: #{dummy_vlm_forward.1} parent=1 // pred_fallthru
      _
    // Predicated region
    $region18: #{dummy_vlm_forward.1} parent=1 // pred_check
      _
    $region19: #{dummy_vlm_forward.1} parent=1 // pred_check_branch
      %50 = sbr.rel (0) target = $region21
    $region20: #{dummy_vlm_forward.1} parent=1 // pred_region
      %51 = dma.done [#allocation4], 16
    $region21: #{dummy_vlm_forward.1} parent=1 // pred_fallthru
      _
    %52 = sfence
    %53 = vsyncpa [#allocation4], 1
    %54 = vsyncpa [#allocation5], 1

</llo_original>
